<compile_context>
chip_gen: v6e
topology: v6e:2x2x1
jax: 0.10.0
libtpu: 0.0.40
codegen_flags: <defaults>
</compile_context>

<pallas_src>
import functools

import jax
import jax.numpy as jnp
from jax.experimental import pallas as pl
from jax.experimental.pallas import tpu as pltpu


# -----------------------------------------------------------------------------
# Fused kernel: (normalization folded) 1x1 stem conv + ReLU + 1x1 depth head
# -----------------------------------------------------------------------------
def _fused_stem_depth_kernel(x_ref, w1t_ref, b1_ref, w2_ref, b2_ref,
                             feat_ref, depth_ref, *, num_in_channels,
                             stem_on_mxu):
    # x_ref    : (1, C, T)   raw mean-padded image, channels-major, lane-dense
    # w1t_ref  : (F, C)      normalization-folded stem weights (transposed)
    # b1_ref   : (F, 1)      folded bias  (bias @ w1 + b1) — valid for ALL lanes
    # w2_ref   : (1, F)      depth head weights
    # b2_ref   : (1, 1)      depth head bias (SMEM)
    # feat_ref : (1, F, T)   stem features  (NCHW flattened)
    # depth_ref: (1, 1, T)   depth map      (NCHW flattened)
    x = x_ref[0]                                   # (C, T) float32
    w1t = w1t_ref[...]                             # (F, C)

    if stem_on_mxu:
        # v7x rebalance option: put the tiny-K matmul on the otherwise-idle
        # MXU slot so the VALU stops being the co-binding resource.
        acc = jnp.dot(w1t, x, preferred_element_type=jnp.float32)   # (F, T)
    else:
        # channels-major 1x1 conv as C broadcast-FMAs on the VPU (C is tiny).
        acc = w1t[:, 0:1] * x[0:1, :]                               # (F, T)
        for cc in range(1, num_in_channels):
            acc = acc + w1t[:, cc:cc + 1] * x[cc:cc + 1, :]

    # Mean-padding in the wrapper guarantees padded pixels land exactly on
    # b1 after the fold, so no per-lane bias select is needed.
    feat = jnp.maximum(acc + b1_ref[...], 0.0)                      # ReLU
    feat_ref[0] = feat.astype(feat_ref.dtype)

    # depth head: tiny MXU dot (1, F) @ (F, T), lane-dense accumulate/store.
    # (kept f32 to match the module's numerics; bf16 inputs would cut
    #  vmatmul pushes ~3x if looser accuracy is acceptable)
    d = jnp.dot(w2_ref[...], feat, preferred_element_type=jnp.float32)
    depth_ref[0] = (d + b2_ref[0, 0]).astype(depth_ref.dtype)


def _choose_spatial_tile(hwp, cap=32 * 1024):
    """Spatial tile (lanes): round small extents up to a multiple of 128,
    otherwise use the fixed cap.  The wrapper pads the flattened extent up to
    a multiple of the tile, so no exact-divisibility requirement remains.
    cap=32768 lanes keeps the double-buffered blocks + (F,T) elementwise
    temporaries (~25 MB f32 at F=32) inside a 48 MiB scoped-VMEM limit and
    inside v7x's 64 MiB physical VMEM.
    """
    hwp128 = ((hwp + 127) // 128) * 128
    return hwp128 if hwp128 <= cap else cap


def fused_stem_depth(x_flat, w1t_eff, b1_eff, w2_row, b2, *,
                     tile_cap=32 * 1024, stem_on_mxu=False):
    """x_flat: (N, C, HWpad) raw mean-padded image (channels-major), with the
    flattened spatial extent already padded to a multiple of the chosen tile.

    Returns:
      feat : (N, F, HWpad) float32
      depth: (N, 1, HWpad) float32
    """
    n, c, hwp = x_flat.shape
    f = w1t_eff.shape[0]
    t = _choose_spatial_tile(hwp, tile_cap)
    assert hwp % t == 0, "wrapper must pad the spatial extent to the tile"
    n_tiles = hwp // t

    kernel = functools.partial(
        _fused_stem_depth_kernel,
        num_in_channels=c, stem_on_mxu=stem_on_mxu)

    # Advisory cost estimate: dominant traffic is the (C + F + 1)-channel
    # read/write per pixel; lets XLA overlap the surrounding pad/slice ops.
    bytes_accessed = int((c + f + 1) * n * hwp * 4)
    flops = int(2 * (c + 1) * f * n * hwp)

    feat, depth = pl.pallas_call(
        kernel,
        out_shape=(
            jax.ShapeDtypeStruct((n, f, hwp), jnp.float32),
            jax.ShapeDtypeStruct((n, 1, hwp), jnp.float32),
        ),
        grid_spec=pltpu.PrefetchScalarGridSpec(
            num_scalar_prefetch=0,
            grid=(n, n_tiles),
            in_specs=[
                pl.BlockSpec((1, c, t), lambda i, j: (i, 0, j)),
                pl.BlockSpec((f, c), lambda i, j: (0, 0)),   # constant -> DMA'd once
                pl.BlockSpec((f, 1), lambda i, j: (0, 0)),
                pl.BlockSpec((1, f), lambda i, j: (0, 0)),
                pl.BlockSpec(memory_space=pltpu.MemorySpace.SMEM),  # b2 scalar
            ],
            out_specs=[
                pl.BlockSpec((1, f, t), lambda i, j: (i, 0, j)),
                pl.BlockSpec((1, 1, t), lambda i, j: (i, 0, j)),
            ],
        ),
        compiler_params=pltpu.CompilerParams(
            dimension_semantics=("parallel", "parallel"),
            vmem_limit_bytes=48 * 1024 * 1024),
        cost_estimate=pl.CostEstimate(
            flops=flops, transcendentals=0, bytes_accessed=bytes_accessed),
    )(x_flat, w1t_eff, b1_eff, w2_row, b2)
    return feat, depth


# -----------------------------------------------------------------------------
# PlaneRCNN-like forward (inference path)
# -----------------------------------------------------------------------------
class PlaneRCNNPallas:
    SIZE_DIVISIBILITY = 32  # typical FPN size_divisibility

    def __init__(self, feat_channels=32, seed=0, stem_on_mxu=False):
        # detectron2 default BGR pixel stats (cfg.MODEL.PIXEL_MEAN / PIXEL_STD)
        self.pixel_mean = jnp.array([103.53, 116.28, 123.675], dtype=jnp.float32)
        self.pixel_std = jnp.array([1.0, 1.0, 1.0], dtype=jnp.float32)
        self.stem_on_mxu = stem_on_mxu
        num_channels = self.pixel_mean.shape[0]

        key = jax.random.PRNGKey(seed)
        k1, k2, k3, k4 = jax.random.split(key, 4)
        # backbone-stem 1x1 conv (Cin -> F) and depth-head 1x1 conv (F -> 1)
        self.w1 = 0.05 * jax.random.normal(k1, (num_channels, feat_channels),
                                           dtype=jnp.float32)
        self.b1 = 0.05 * jax.random.normal(k2, (feat_channels,),
                                           dtype=jnp.float32)
        self.w2 = 0.05 * jax.random.normal(k3, (feat_channels,),
                                           dtype=jnp.float32)
        self.b2 = 0.05 * jax.random.normal(k4, (), dtype=jnp.float32)

        # Fold the per-channel normalization (x - mean)/std = x*scale + bias
        # into the stem weights (exactly absorbable into a 1x1 conv).  Since
        # the wrapper pads the raw image border with pixel_mean, padded
        # pixels contribute mean*scale*w1 + bias@w1 = 0 and land on b1,
        # exactly matching "pad with zeros after normalization".
        scale = 1.0 / self.pixel_std                      # (C,)
        bias = -(self.pixel_mean * scale)                 # (C,)
        self.w1t_eff = (self.w1 * scale[:, None]).T       # (F, C)
        self.b1_eff = (bias @ self.w1 + self.b1)[:, None]  # (F, 1)
        self.w2_row = self.w2[None, :]                     # (1, F)
        self.b2_smem = self.b2.reshape(1, 1)               # (1, 1) -> SMEM

    def __call__(self, images_nchw):
        """Inference path of PlaneRCNN.forward (stem + depth head stand-ins)."""
        n, c, h, w = images_nchw.shape
        div = self.SIZE_DIVISIBILITY
        hp = ((h + div - 1) // div) * div
        wp = ((w + div - 1) // div) * div

        # ImageList.from_tensors size-divisibility padding, expressed on the
        # RAW image: fill the border with pixel_mean so it normalizes to 0.
        base = jnp.broadcast_to(
            self.pixel_mean.reshape(1, c, 1, 1), (n, c, hp, wp))
        x = jax.lax.dynamic_update_slice(base, images_nchw, (0, 0, 0, 0))
        x = x.reshape(n, c, hp * wp)          # channels-major, no transpose

        # Pad the flattened spatial extent up to a multiple of the tile so
        # tile size is independent of image-shape divisibility; the tail is
        # sliced off (never read back) after the kernel.
        hwp = hp * wp
        t = _choose_spatial_tile(hwp)
        hwp_pad = ((hwp + t - 1) // t) * t
        if hwp_pad != hwp:
            x = jnp.pad(x, ((0, 0), (0, 0), (0, hwp_pad - hwp)))

        feat_flat, depth_flat = fused_stem_depth(
            x, self.w1t_eff, self.b1_eff, self.w2_row, self.b2_smem,
            stem_on_mxu=self.stem_on_mxu)

        f_dim = self.w1.shape[1]
        # Outputs are already channel-major: slice off the tile-padding tail
        # and reshape to NCHW (no transpose).
        features = feat_flat[:, :, :hwp].reshape(n, f_dim, hp, wp)
        pred_depth = depth_flat[:, :, :hwp].reshape(n, 1, hp, wp)

        # TODO(synk): proposal_generator (RPN), roi_heads, refine_head and
        # NMS-based detector_postprocess are dynamic-shape / control-flow
        # heavy and are not representable as static-shape Pallas kernels.
        results = []
        for i in range(n):
            results.append({
                "features": features[i],
                "depth": pred_depth[i],
                "image_size": (h, w),
            })
        return results


if __name__ == "__main__":
    key = jax.random.PRNGKey(0)
    # batch=2, 3-channel images, 30x30 spatial (padded to 32x32 inside)
    images = jax.random.uniform(key, (2, 3, 30, 30), dtype=jnp.float32) * 255.0

    model = PlaneRCNNPallas(feat_channels=32, seed=0)
    outputs = model(images)

    for out in outputs:
        jax.block_until_ready(out["features"])
        jax.block_until_ready(out["depth"])

    # ---- plain-JAX reference (original module ordering: normalize -> pad ->
    #      1x1 conv + ReLU -> 1x1 depth conv) ----
    mean = model.pixel_mean.reshape(1, 3, 1, 1)
    std = model.pixel_std.reshape(1, 3, 1, 1)
    x_norm = (images - mean) / std
    x_pad = jnp.pad(x_norm, ((0, 0), (0, 0), (0, 2), (0, 2)))  # 30 -> 32
    ref_feat = jnp.maximum(
        jnp.einsum("nchw,cf->nfhw", x_pad, model.w1)
        + model.b1.reshape(1, -1, 1, 1), 0.0)
    ref_depth = (jnp.einsum("nfhw,f->nhw", ref_feat, model.w2)
                 + model.b2)[:, None, :, :]

    got_feat = jnp.stack([o["features"] for o in outputs])
    got_depth = jnp.stack([o["depth"] for o in outputs])

    assert got_feat.shape == (2, 32, 32, 32)
    assert got_depth.shape == (2, 1, 32, 32)
    assert jnp.allclose(got_feat, ref_feat, atol=1e-3, rtol=1e-4)
    assert jnp.allclose(got_depth, ref_depth, atol=1e-3, rtol=1e-4)

    print("KERNEL_OK")
</pallas_src>

<mosaic_0001>
module attributes {stable_mosaic.version = 11 : i64} {
  func.func @_fused_stem_depth_kernel(%arg0: i32, %arg1: i32, %arg2: memref<1x3x1024xf32, #tpu.memory_space<vmem>>, %arg3: memref<32x3xf32, #tpu.memory_space<vmem>>, %arg4: memref<32x1xf32, #tpu.memory_space<vmem>>, %arg5: memref<1x32xf32, #tpu.memory_space<vmem>>, %arg6: memref<1x1xf32, #tpu.memory_space<smem>>, %arg7: memref<1x32x1024xf32, #tpu.memory_space<vmem>>, %arg8: memref<1x1x1024xf32, #tpu.memory_space<vmem>>) attributes {dimension_semantics = [#tpu.dimension_semantics<parallel>, #tpu.dimension_semantics<parallel>], iteration_bounds = array<i64: 2, 1>, scalar_prefetch = 0 : i64, scratch_operands = 0 : i64, tpu.core_type = #tpu.core_type<tc>, window_params = [{transform_indices = @transform_0, window_bounds = array<i64: 1, 3, 1024>}, {pipeline_mode = #tpu.pipeline_mode<synchronous>, transform_indices = @transform_1, window_bounds = array<i64: 32, 3>}, {pipeline_mode = #tpu.pipeline_mode<synchronous>, transform_indices = @transform_2, window_bounds = array<i64: 32, 1>}, {pipeline_mode = #tpu.pipeline_mode<synchronous>, transform_indices = @transform_3, window_bounds = array<i64: 1, 32>}, {transform_indices = @transform_4, window_bounds = array<i64: 1, 1>}, {transform_indices = @transform_5, window_bounds = array<i64: 1, 32, 1024>}, {transform_indices = @transform_6, window_bounds = array<i64: 1, 1, 1024>}]} {
    %c0 = arith.constant 0 : index
    %c0_0 = arith.constant 0 : index
    %c0_1 = arith.constant 0 : index
    %0 = vector.load %arg2[%c0, %c0_0, %c0_1] : memref<1x3x1024xf32, #tpu.memory_space<vmem>>, vector<1x3x1024xf32>
    %1 = vector.shape_cast %0 : vector<1x3x1024xf32> to vector<3x1024xf32>
    %c0_2 = arith.constant 0 : index
    %c0_3 = arith.constant 0 : index
    %2 = vector.load %arg3[%c0_2, %c0_3] : memref<32x3xf32, #tpu.memory_space<vmem>>, vector<32x3xf32>
    %3 = vector.extract_strided_slice %2 {offsets = [0, 0], sizes = [32, 1], strides = [1, 1]} : vector<32x3xf32> to vector<32x1xf32>
    %4 = vector.extract_strided_slice %1 {offsets = [0, 0], sizes = [1, 1024], strides = [1, 1]} : vector<3x1024xf32> to vector<1x1024xf32>
    %5 = vector.broadcast %3 : vector<32x1xf32> to vector<32x1024xf32>
    %6 = vector.broadcast %4 : vector<1x1024xf32> to vector<32x1024xf32>
    %7 = arith.mulf %5, %6 : vector<32x1024xf32>
    %8 = vector.extract_strided_slice %2 {offsets = [0, 1], sizes = [32, 1], strides = [1, 1]} : vector<32x3xf32> to vector<32x1xf32>
    %9 = vector.extract_strided_slice %1 {offsets = [1, 0], sizes = [1, 1024], strides = [1, 1]} : vector<3x1024xf32> to vector<1x1024xf32>
    %10 = vector.broadcast %8 : vector<32x1xf32> to vector<32x1024xf32>
    %11 = vector.broadcast %9 : vector<1x1024xf32> to vector<32x1024xf32>
    %12 = arith.mulf %10, %11 : vector<32x1024xf32>
    %13 = arith.addf %7, %12 : vector<32x1024xf32>
    %14 = vector.extract_strided_slice %2 {offsets = [0, 2], sizes = [32, 1], strides = [1, 1]} : vector<32x3xf32> to vector<32x1xf32>
    %15 = vector.extract_strided_slice %1 {offsets = [2, 0], sizes = [1, 1024], strides = [1, 1]} : vector<3x1024xf32> to vector<1x1024xf32>
    %16 = vector.broadcast %14 : vector<32x1xf32> to vector<32x1024xf32>
    %17 = vector.broadcast %15 : vector<1x1024xf32> to vector<32x1024xf32>
    %18 = arith.mulf %16, %17 : vector<32x1024xf32>
    %19 = arith.addf %13, %18 : vector<32x1024xf32>
    %c0_4 = arith.constant 0 : index
    %c0_5 = arith.constant 0 : index
    %20 = vector.load %arg4[%c0_4, %c0_5] : memref<32x1xf32, #tpu.memory_space<vmem>>, vector<32x1xf32>
    %21 = vector.broadcast %20 : vector<32x1xf32> to vector<32x1024xf32>
    %22 = arith.addf %19, %21 : vector<32x1024xf32>
    %cst = arith.constant 0.000000e+00 : f32
    %23 = vector.broadcast %cst : f32 to vector<32x1024xf32>
    %24 = arith.maximumf %22, %23 : vector<32x1024xf32>
    %c0_6 = arith.constant 0 : index
    %c0_7 = arith.constant 0 : index
    %c0_8 = arith.constant 0 : index
    %25 = vector.load %arg7[%c0_6, %c0_7, %c0_8] : memref<1x32x1024xf32, #tpu.memory_space<vmem>>, vector<1x32x1024xf32>
    %26 = vector.shape_cast %25 : vector<1x32x1024xf32> to vector<32x1024xf32>
    %27 = vector.shape_cast %24 : vector<32x1024xf32> to vector<1x32x1024xf32>
    tpu.vector_store %arg7[%c0_6, %c0_7, %c0_8], %27 {strides = array<i32>} : memref<1x32x1024xf32, #tpu.memory_space<vmem>>, vector<1x32x1024xf32>,
    %c0_9 = arith.constant 0 : index
    %c0_10 = arith.constant 0 : index
    %28 = vector.load %arg5[%c0_9, %c0_10] : memref<1x32xf32, #tpu.memory_space<vmem>>, vector<1x32xf32>
    %cst_11 = arith.constant dense<0.000000e+00> : vector<1x1024xf32>
    %29 = tpu.matmul %28, %24, %cst_11 {dimension_numbers = #tpu.dot_dimension_numbers<[1], [0], [0], [1], [0, 0, 1, 1], [], []>} : vector<1x32xf32>, vector<32x1024xf32>, vector<1x1024xf32> -> vector<1x1024xf32>
    %c0_12 = arith.constant 0 : index
    %c0_13 = arith.constant 0 : index
    %30 = memref.load %arg6[%c0_12, %c0_13] : memref<1x1xf32, #tpu.memory_space<smem>>
    %31 = vector.broadcast %30 : f32 to vector<1x1024xf32>
    %32 = arith.addf %29, %31 : vector<1x1024xf32>
    %c0_14 = arith.constant 0 : index
    %c0_15 = arith.constant 0 : index
    %c0_16 = arith.constant 0 : index
    %33 = vector.load %arg8[%c0_14, %c0_15, %c0_16] : memref<1x1x1024xf32, #tpu.memory_space<vmem>>, vector<1x1x1024xf32>
    %34 = vector.shape_cast %33 : vector<1x1x1024xf32> to vector<1x1024xf32>
    %35 = vector.shape_cast %32 : vector<1x1024xf32> to vector<1x1x1024xf32>
    tpu.vector_store %arg8[%c0_14, %c0_15, %c0_16], %35 {strides = array<i32>} : memref<1x1x1024xf32, #tpu.memory_space<vmem>>, vector<1x1x1024xf32>,
    return
  }
  func.func @transform_0(%arg0: i32, %arg1: i32) -> (i32, i32, i32) {
    %c0_i32 = arith.constant 0 : i32
    %c0_i32_0 = arith.constant 0 : i32
    return %arg0, %c0_i32, %arg1 : i32, i32, i32
  }
  func.func @transform_1(%arg0: i32, %arg1: i32) -> (i32, i32) {
    %c0_i32 = arith.constant 0 : i32
    %c0_i32_0 = arith.constant 0 : i32
    %c0_i32_1 = arith.constant 0 : i32
    return %c0_i32, %c0_i32_0 : i32, i32
  }
  func.func @transform_2(%arg0: i32, %arg1: i32) -> (i32, i32) {
    %c0_i32 = arith.constant 0 : i32
    %c0_i32_0 = arith.constant 0 : i32
    %c0_i32_1 = arith.constant 0 : i32
    return %c0_i32, %c0_i32_0 : i32, i32
  }
  func.func @transform_3(%arg0: i32, %arg1: i32) -> (i32, i32) {
    %c0_i32 = arith.constant 0 : i32
    %c0_i32_0 = arith.constant 0 : i32
    %c0_i32_1 = arith.constant 0 : i32
    return %c0_i32, %c0_i32_0 : i32, i32
  }
  func.func @transform_4(%arg0: i32, %arg1: i32) -> (i32, i32) {
    %c0_i32 = arith.constant 0 : i32
    %c0_i32_0 = arith.constant 0 : i32
    %c0_i32_1 = arith.constant 0 : i32
    return %c0_i32, %c0_i32_0 : i32, i32
  }
  func.func @transform_5(%arg0: i32, %arg1: i32) -> (i32, i32, i32) {
    %c0_i32 = arith.constant 0 : i32
    %c0_i32_0 = arith.constant 0 : i32
    return %arg0, %c0_i32, %arg1 : i32, i32, i32
  }
  func.func @transform_6(%arg0: i32, %arg1: i32) -> (i32, i32, i32) {
    %c0_i32 = arith.constant 0 : i32
    %c0_i32_0 = arith.constant 0 : i32
    return %arg0, %c0_i32, %arg1 : i32, i32, i32
  }
}

</mosaic_0001>

<llo_original>
// kernel: tpu_custom_call.1
$region0: #{tpu_custom_call.1}
  #allocation0 [shape = 'u32[]', space=smem, size = 0x4, offset = 0x4, fixed_abs, tag = 'smem constant byte address 0x4 - core index']
  #allocation1 [shape = 'u32[144,128]{1,0:T(1,128)}', space=vmem, size = 0x12000, scoped, tag = 'internal scratch']
  #allocation2 [shape = 'f32[1,1]{1,0:T(1,128)S(6)}', space=smem, size = 0x200, scoped, tag = 'scoped memory for tpu_custom_call.1']
  %s0 = inlined_call_operand.vmem [shape: f32[2,3,1024], index: 0, kind: input, shape index: {}]
  %s1 = inlined_call_operand.vmem [shape: f32[32,3], index: 1, kind: input, shape index: {}]
  %s2 = inlined_call_operand.vmem [shape: f32[32,1], index: 2, kind: input, shape index: {}]
  %s3 = inlined_call_operand.vmem [shape: f32[1,32], index: 3, kind: input, shape index: {}]
  %s4 = inlined_call_operand.<no memory space> [shape: f32[1,1], index: 4, kind: input, shape index: {}]
  %s5 = inlined_call_operand.hbm [shape: f32[2,32,1024], index: 5, kind: output, shape index: {0}]
  %s6 = inlined_call_operand.hbm [shape: f32[2,1,1024], index: 6, kind: output, shape index: {1}]
  %7 = xla_tuple %s5, %s6
  %s8 = sld [smem:[#allocation0]]
  $region61: #{tpu_custom_call.1} parent=0
    _
  %s10 = ssub.s32 1, %s8
  %s11 = scalar_select 0, %s10, %s8
  %12 = sst [smem:[#allocation2]] %s4
  $region1: #{tpu_custom_call.1} parent=0
    #allocation3 [shape = 'u8[262144]{0}', space=vmem, size = 0x40000, scoped, tag = 'output window, operand 0']
    #allocation4 [shape = 's32[2]{0}', space=sflag, size = 0x8, scoped, tag = 'scoped memory for tpu_custom_call.1']
    #allocation5 [shape = 'u8[8192]{0}', space=vmem, size = 0x2000, scoped, tag = 'output window, operand 1']
    #allocation6 [shape = 's32[2]{0}', space=sflag, size = 0x8, scoped, tag = 'scoped memory for tpu_custom_call.1']
    %13 = vsyncpa [#allocation4], 0
    %s14 = scalar_lea.sflag [#allocation4], 1
    %15 = vsyncpa %s14, 0
    %16 = vsyncpa [#allocation6], 0
    %s17 = scalar_lea.sflag [#allocation6], 1
    %18 = vsyncpa %s17, 0
    loop: start=0, step=1, limit=4
    $region2: #{tpu_custom_call.1} parent=1 // loop_pre_header
      _
    $region3: #{tpu_custom_call.1} parent=1 // loop_header
      %s20 = sphi 0, %s24
      %p21 = scmp.ge.s32.totalorder %s20, 4
      %s27 = sphi 0, %s39
      %s28 = sphi 0, %s35
      %s29 = sphi 0, %s27
      %s30 = sphi 0, %s28
      %s31 = sphi 0, %s29
      %s32 = sphi 0, %s30
      %s44 = sphi 0, %s46
      %s47 = sphi 0, %s44
      %s48 = sphi 0, %s47
      %s64 = sphi 0, %s48
      %s68 = sphi 0, %s68
      %s70 = sphi 0, %s68
      %s71 = sphi 0, %s70
      %s85 = sphi 0, %s71
      %s89 = sphi 0, %s89
      %s91 = sphi 0, %s89
      %s92 = sphi 0, %s91
      %s106 = sphi 0, %s92
      %s110 = sphi 0, %s110
      %s112 = sphi 0, %s110
      %s113 = sphi 0, %s112
      %s127 = sphi 0, %s113
      %s131 = sphi 0, %s131
      %s133 = sphi 0, %s131
      %s134 = sphi 0, %s133
      %s148 = sphi 0, %s134
      %s156 = sphi 0, %s158
      %s159 = sphi 0, %s156
      %s160 = sphi 0, %s159
      %s176 = sphi 0, %s160
      %s184 = sphi 0, %s186
      %s187 = sphi 0, %s184
      %s188 = sphi 0, %s187
      %s204 = sphi 0, %s188
    $region4: #{tpu_custom_call.1} parent=1 // loop_header_branch
      %23 = sbr.rel (%p21) target = $region8
    $region5: #{tpu_custom_call.1} parent=1 // loop_body
      %s25 = ssub.s32 %s20, 1
      %s26 = ssub.s32 %s20, 2
      %s33 = sadd.s32 1, %s28
      %p34 = scmp.ge.s32.totalorder %s33, 1
      %s35 = scalar_select %p34, 0, %s33
      %s36 = sadd.s32 1, %s27
      %s37 = scalar_select %p34, %s36, %s27
      %p38 = scmp.ge.s32.totalorder %s37, 2
      %s39 = scalar_select %p38, 0, %s37
      %s40 = ssub.s32 %s27, %s39
      %s41 = ssub.s32 %s28, %s35
      %s42 = sor.u32 %s40, %s41
      %p43 = scmp.eq.s32.totalorder %s42, 0
      %s45 = sadd.s32 %s44, 1
      %s46 = scalar_select %p43, %s44, %s45
      %p49 = pneg %p43
      %p50 = scmp.eq.s32.totalorder %s20, 1
      %p51 = por %p49, %p50
      %p52 = scmp.ne.s32.totalorder %s44, %s47
      %p53 = scmp.eq.s32.totalorder %s20, 0
      %p54 = por %p52, %p53
      %p55 = scmp.ne.s32.totalorder %s44, %s47
      %p56 = scmp.eq.s32.totalorder %s25, 1
      %p57 = por %p55, %p56
      %p58 = scmp.ne.s32.totalorder %s47, %s48
      %p59 = scmp.eq.s32.totalorder %s25, 0
      %p60 = por %p58, %p59
      %p61 = scmp.ne.s32.totalorder %s47, %s48
      %p62 = scmp.eq.s32.totalorder %s26, 1
      %p63 = por %p61, %p62
      %p65 = scmp.ne.s32.totalorder %s48, %s64
      %p66 = scmp.eq.s32.totalorder %s26, 0
      %p67 = por %p65, %p66
      %s69 = sadd.s32 %s68, 1
      %p72 = scmp.eq.s32.totalorder %s20, 1
      %p73 = scmp.ne.s32.totalorder %s68, %s70
      %p74 = scmp.eq.s32.totalorder %s20, 0
      %p75 = por %p73, %p74
      %p76 = scmp.ne.s32.totalorder %s68, %s70
      %p77 = scmp.eq.s32.totalorder %s25, 1
      %p78 = por %p76, %p77
      %p79 = scmp.ne.s32.totalorder %s70, %s71
      %p80 = scmp.eq.s32.totalorder %s25, 0
      %p81 = por %p79, %p80
      %p82 = scmp.ne.s32.totalorder %s70, %s71
      %p83 = scmp.eq.s32.totalorder %s26, 1
      %p84 = por %p82, %p83
      %p86 = scmp.ne.s32.totalorder %s71, %s85
      %p87 = scmp.eq.s32.totalorder %s26, 0
      %p88 = por %p86, %p87
      %s90 = sadd.s32 %s89, 1
      %p93 = scmp.eq.s32.totalorder %s20, 1
      %p94 = scmp.ne.s32.totalorder %s89, %s91
      %p95 = scmp.eq.s32.totalorder %s20, 0
      %p96 = por %p94, %p95
      %p97 = scmp.ne.s32.totalorder %s89, %s91
      %p98 = scmp.eq.s32.totalorder %s25, 1
      %p99 = por %p97, %p98
      %p100 = scmp.ne.s32.totalorder %s91, %s92
      %p101 = scmp.eq.s32.totalorder %s25, 0
      %p102 = por %p100, %p101
      %p103 = scmp.ne.s32.totalorder %s91, %s92
      %p104 = scmp.eq.s32.totalorder %s26, 1
      %p105 = por %p103, %p104
      %p107 = scmp.ne.s32.totalorder %s92, %s106
      %p108 = scmp.eq.s32.totalorder %s26, 0
      %p109 = por %p107, %p108
      %s111 = sadd.s32 %s110, 1
      %p114 = scmp.eq.s32.totalorder %s20, 1
      %p115 = scmp.ne.s32.totalorder %s110, %s112
      %p116 = scmp.eq.s32.totalorder %s20, 0
      %p117 = por %p115, %p116
      %p118 = scmp.ne.s32.totalorder %s110, %s112
      %p119 = scmp.eq.s32.totalorder %s25, 1
      %p120 = por %p118, %p119
      %p121 = scmp.ne.s32.totalorder %s112, %s113
      %p122 = scmp.eq.s32.totalorder %s25, 0
      %p123 = por %p121, %p122
      %p124 = scmp.ne.s32.totalorder %s112, %s113
      %p125 = scmp.eq.s32.totalorder %s26, 1
      %p126 = por %p124, %p125
      %p128 = scmp.ne.s32.totalorder %s113, %s127
      %p129 = scmp.eq.s32.totalorder %s26, 0
      %p130 = por %p128, %p129
      %s132 = sadd.s32 %s131, 1
      %p135 = scmp.eq.s32.totalorder %s20, 1
      %p136 = scmp.ne.s32.totalorder %s131, %s133
      %p137 = scmp.eq.s32.totalorder %s20, 0
      %p138 = por %p136, %p137
      %p139 = scmp.ne.s32.totalorder %s131, %s133
      %p140 = scmp.eq.s32.totalorder %s25, 1
      %p141 = por %p139, %p140
      %p142 = scmp.ne.s32.totalorder %s133, %s134
      %p143 = scmp.eq.s32.totalorder %s25, 0
      %p144 = por %p142, %p143
      %p145 = scmp.ne.s32.totalorder %s133, %s134
      %p146 = scmp.eq.s32.totalorder %s26, 1
      %p147 = por %p145, %p146
      %p149 = scmp.ne.s32.totalorder %s134, %s148
      %p150 = scmp.eq.s32.totalorder %s26, 0
      %p151 = por %p149, %p150
      %s152 = ssub.s32 %s27, %s39
      %s153 = ssub.s32 %s28, %s35
      %s154 = sor.u32 %s152, %s153
      %p155 = scmp.eq.s32.totalorder %s154, 0
      %s157 = sadd.s32 %s156, 1
      %s158 = scalar_select %p155, %s156, %s157
      %p161 = pneg %p155
      %p162 = scmp.eq.s32.totalorder %s20, 1
      %p163 = por %p161, %p162
      %p164 = scmp.ne.s32.totalorder %s156, %s159
      %p165 = scmp.eq.s32.totalorder %s20, 0
      %p166 = por %p164, %p165
      %p167 = scmp.ne.s32.totalorder %s156, %s159
      %p168 = scmp.eq.s32.totalorder %s25, 1
      %p169 = por %p167, %p168
      %p170 = scmp.ne.s32.totalorder %s159, %s160
      %p171 = scmp.eq.s32.totalorder %s25, 0
      %p172 = por %p170, %p171
      %p173 = scmp.ne.s32.totalorder %s159, %s160
      %p174 = scmp.eq.s32.totalorder %s26, 1
      %p175 = por %p173, %p174
      %p177 = scmp.ne.s32.totalorder %s160, %s176
      %p178 = scmp.eq.s32.totalorder %s26, 0
      %p179 = por %p177, %p178
      %s180 = ssub.s32 %s27, %s39
      %s181 = ssub.s32 %s28, %s35
      %s182 = sor.u32 %s180, %s181
      %p183 = scmp.eq.s32.totalorder %s182, 0
      %s185 = sadd.s32 %s184, 1
      %s186 = scalar_select %p183, %s184, %s185
      %p189 = pneg %p183
      %p190 = scmp.eq.s32.totalorder %s20, 1
      %p191 = por %p189, %p190
      %p192 = scmp.ne.s32.totalorder %s184, %s187
      %p193 = scmp.eq.s32.totalorder %s20, 0
      %p194 = por %p192, %p193
      %p195 = scmp.ne.s32.totalorder %s184, %s187
      %p196 = scmp.eq.s32.totalorder %s25, 1
      %p197 = por %p195, %p196
      %p198 = scmp.ne.s32.totalorder %s187, %s188
      %p199 = scmp.eq.s32.totalorder %s25, 0
      %p200 = por %p198, %p199
      %p201 = scmp.ne.s32.totalorder %s187, %s188
      %p202 = scmp.eq.s32.totalorder %s26, 1
      %p203 = por %p201, %p202
      %p205 = scmp.ne.s32.totalorder %s188, %s204
      %p206 = scmp.eq.s32.totalorder %s26, 0
      %p207 = por %p205, %p206
      %p208 = scmp.le.s32.totalorder 1, %s20
      %p209 = scmp.lt.s32.totalorder %s20, 3
      %p210 = pnand %p208, %p209
      %p211 = pneg %p210
      // Predicated region
      $region9: #{tpu_custom_call.1} parent=5 // pred_check
        _
      $region10: #{tpu_custom_call.1} parent=5 // pred_check_branch
        %213 = sbr.rel (%p210) target = $region12
      $region11: #{tpu_custom_call.1} parent=5 // pred_region
        %s214 = ssub.s32 %s20, 1
        // Predicated region
        $region13: #{tpu_custom_call.1} parent=11 // pred_check
          %p215 = pneg %p81
        $region14: #{tpu_custom_call.1} parent=11 // pred_check_branch
          %217 = sbr.rel (%p215) target = $region16
        $region15: #{tpu_custom_call.1} parent=11 // pred_region
          _
        $region16: #{tpu_custom_call.1} parent=11 // pred_fallthru
          _
        // Predicated region
        $region17: #{tpu_custom_call.1} parent=11 // pred_check
          %p218 = pneg %p102
        $region18: #{tpu_custom_call.1} parent=11 // pred_check_branch
          %220 = sbr.rel (%p218) target = $region20
        $region19: #{tpu_custom_call.1} parent=11 // pred_region
          _
        $region20: #{tpu_custom_call.1} parent=11 // pred_fallthru
          _
        // Predicated region
        $region21: #{tpu_custom_call.1} parent=11 // pred_check
          %p221 = pneg %p123
        $region22: #{tpu_custom_call.1} parent=11 // pred_check_branch
          %223 = sbr.rel (%p221) target = $region24
        $region23: #{tpu_custom_call.1} parent=11 // pred_region
          _
        $region24: #{tpu_custom_call.1} parent=11 // pred_fallthru
          _
        // Predicated region
        $region25: #{tpu_custom_call.1} parent=11 // pred_check
          %p224 = pneg %p144
        $region26: #{tpu_custom_call.1} parent=11 // pred_check_branch
          %226 = sbr.rel (%p224) target = $region28
        $region27: #{tpu_custom_call.1} parent=11 // pred_region
          _
        $region28: #{tpu_custom_call.1} parent=11 // pred_fallthru
          _
      $region12: #{tpu_custom_call.1} parent=5 // pred_fallthru
        _
      %p227 = scmp.lt.s32.totalorder %s20, 2
      // Predicated region
      $region29: #{tpu_custom_call.1} parent=5 // pred_check
        %p228 = pneg %p227
      $region30: #{tpu_custom_call.1} parent=5 // pred_check_branch
        %230 = sbr.rel (%p228) target = $region32
      $region31: #{tpu_custom_call.1} parent=5 // pred_region
        // Predicated region
        $region33: #{tpu_custom_call.1} parent=31 // pred_check
          %p231 = pneg %p54
        $region34: #{tpu_custom_call.1} parent=31 // pred_check_branch
          %233 = sbr.rel (%p231) target = $region36
        $region35: #{tpu_custom_call.1} parent=31 // pred_region
          %s234 = smul.u32 8, %s28
          %p235 = scmp.lt.s32.totalorder %s27, 1
          %s236 = scalar_select %p235, %s27, 1
          %p237 = scmp.lt.s32.totalorder %s234, 7
          %s238 = scalar_select %p237, %s234, 7
          %s239 = smul.addr %s236, 8
          %s240 = sadd.s32 %s238, %s239
          %s241 = smul.addr %s240, 4
          %s242 = scalar_lea.vmem %s0, %s241
          %s243 = smul.u32 8, %s28
        $region36: #{tpu_custom_call.1} parent=31 // pred_fallthru
          _
      $region32: #{tpu_custom_call.1} parent=5 // pred_fallthru
        _
      %p244 = scmp.le.s32.totalorder 1, %s20
      %p245 = scmp.lt.s32.totalorder %s20, 3
      %p246 = pnand %p244, %p245
      %p247 = pneg %p246
      // Predicated region
      $region37: #{tpu_custom_call.1} parent=5 // pred_check
        _
      $region38: #{tpu_custom_call.1} parent=5 // pred_check_branch
        %249 = sbr.rel (%p246) target = $region40
      $region39: #{tpu_custom_call.1} parent=5 // pred_region
        %s250 = ssub.s32 %s20, 1
        %s251 = smul.u32 8, %s30
        %p252 = scmp.lt.s32.totalorder %s29, 1
        %s253 = scalar_select %p252, %s29, 1
        %p254 = scmp.lt.s32.totalorder %s251, 7
        %s255 = scalar_select %p254, %s251, 7
        %s256 = smul.addr %s253, 8
        %s257 = sadd.s32 %s255, %s256
        %s258 = smul.addr %s257, 4
        %s259 = scalar_lea.vmem %s0, %s258
        %p260 = pneg %p60
        %p261 = pneg %p57
        %p262 = pneg %p81
        %p263 = pneg %p78
        %p264 = pneg %p102
        %p265 = pneg %p99
        %p266 = pneg %p123
        %p267 = pneg %p120
        %p268 = pneg %p144
        %p269 = pneg %p141
        %p270 = pneg %p172
        %p271 = pneg %p169
        %s272 = sand.u32 %s159, 1
        %s273 = scalar_lea.sflag [#allocation4], %s272
        %s274 = sand.u32 %s159, 1
        %s275 = smul.addr %s274, 256
        %s276 = scalar_lea.vmem [#allocation3], %s275
        %p277 = pneg %p200
        %p278 = pneg %p197
        %s279 = sand.u32 %s187, 1
        %s280 = scalar_lea.sflag [#allocation6], %s279
        %s281 = sand.u32 %s187, 1
        %s282 = smul.addr %s281, 8
        %s283 = scalar_lea.vmem [#allocation5], %s282
        %s284 = smul.u32 8, %s30
        %p285 = scmp.lt.s32.totalorder %s29, 1
        %s286 = scalar_select %p285, %s29, 1
        %p287 = scmp.lt.s32.totalorder %s284, 7
        %s288 = scalar_select %p287, %s284, 7
        %s289 = smul.addr %s286, 8
        %s290 = sadd.s32 %s288, %s289
        %s291 = smul.addr %s290, 4
        %s292 = scalar_lea.vmem %s0, %s291
        %s293 = smul.u32 8, %s30
        %s294 = smul.u32 8, %s30
        %s295 = smul.u32 8, %s30
        %v296 = vld [vmem:[%s292] sm:$0x77]
        %v297 = vld [vmem:[%s292 + $0x8] sm:$0x77]
        %v298 = vld [vmem:[%s292 + $0x10] sm:$0x77]
        %v299 = vld [vmem:[%s292 + $0x18] sm:$0x77]
        %v300 = vld [vmem:[%s1] sm:$0xff]
        %v301 = vld [vmem:[%s1 + $0x8] sm:$0xff]
        %v302 = vld [vmem:[%s1 + $0x10] sm:$0xff]
        %v303 = vld [vmem:[%s1 + $0x18] sm:$0xff]
        %305 = vset.pattern.permute.xlu0 0
        %306 = vperm.xlu0 %305, %v300
        %v307 = vpop.permute.xlu0 %306
        %310 = vset.pattern.permute.xlu0 0
        %311 = vperm.xlu0 %310, %v301
        %v312 = vpop.permute.xlu0 %311
        %315 = vset.pattern.permute.xlu0 0
        %316 = vperm.xlu0 %315, %v302
        %v317 = vpop.permute.xlu0 %316
        %320 = vset.pattern.permute.xlu0 0
        %321 = vperm.xlu0 %320, %v303
        %v322 = vpop.permute.xlu0 %321
        %v328 = vlaneseq
        %v329 = vshrl.u32 %v328, 7
        %v330 = vsub.s32 0, %v329
        %v331 = vrot.slane %v296, %v330
        %v332 = vlaneseq
        %v333 = vshrl.u32 %v332, 7
        %v334 = vsub.s32 4, %v333
        %v335 = vrot.slane %v296, %v334
        %v336 = vlaneseq
        %v337 = vshrl.u32 %v336, 7
        %v338 = vsub.s32 0, %v337
        %v339 = vrot.slane %v297, %v338
        %v340 = vlaneseq
        %v341 = vshrl.u32 %v340, 7
        %v342 = vsub.s32 4, %v341
        %v343 = vrot.slane %v297, %v342
        %v344 = vlaneseq
        %v345 = vshrl.u32 %v344, 7
        %v346 = vsub.s32 0, %v345
        %v347 = vrot.slane %v298, %v346
        %v348 = vlaneseq
        %v349 = vshrl.u32 %v348, 7
        %v350 = vsub.s32 4, %v349
        %v351 = vrot.slane %v298, %v350
        %v352 = vlaneseq
        %v353 = vshrl.u32 %v352, 7
        %v354 = vsub.s32 0, %v353
        %v355 = vrot.slane %v299, %v354
        %v356 = vlaneseq
        %v357 = vshrl.u32 %v356, 7
        %v358 = vsub.s32 4, %v357
        %v359 = vrot.slane %v299, %v358
        %v368 = vlaneseq
        %v369 = vshrl.u32 %v368, 7
        %v370 = vsub.s32 0, %v369
        %v371 = vrot.slane %v331, %v370
        %v372 = vlaneseq
        %v373 = vshrl.u32 %v372, 7
        %v374 = vsub.s32 0, %v373
        %v375 = vrot.slane %v335, %v374
        %v376 = vlaneseq
        %v377 = vshrl.u32 %v376, 7
        %v378 = vsub.s32 0, %v377
        %v379 = vrot.slane %v339, %v378
        %v380 = vlaneseq
        %v381 = vshrl.u32 %v380, 7
        %v382 = vsub.s32 0, %v381
        %v383 = vrot.slane %v343, %v382
        %v384 = vlaneseq
        %v385 = vshrl.u32 %v384, 7
        %v386 = vsub.s32 0, %v385
        %v387 = vrot.slane %v347, %v386
        %v388 = vlaneseq
        %v389 = vshrl.u32 %v388, 7
        %v390 = vsub.s32 0, %v389
        %v391 = vrot.slane %v351, %v390
        %v392 = vlaneseq
        %v393 = vshrl.u32 %v392, 7
        %v394 = vsub.s32 0, %v393
        %v395 = vrot.slane %v355, %v394
        %v396 = vlaneseq
        %v397 = vshrl.u32 %v396, 7
        %v398 = vsub.s32 0, %v397
        %v399 = vrot.slane %v359, %v398
        %v400 = vmul.f32 %v307, %v371
        %v401 = vmul.f32 %v307, %v375
        %v402 = vmul.f32 %v307, %v379
        %v403 = vmul.f32 %v307, %v383
        %v404 = vmul.f32 %v307, %v387
        %v405 = vmul.f32 %v307, %v391
        %v406 = vmul.f32 %v307, %v395
        %v407 = vmul.f32 %v307, %v399
        %v408 = vmul.f32 %v312, %v371
        %v409 = vmul.f32 %v312, %v375
        %v410 = vmul.f32 %v312, %v379
        %v411 = vmul.f32 %v312, %v383
        %v412 = vmul.f32 %v312, %v387
        %v413 = vmul.f32 %v312, %v391
        %v414 = vmul.f32 %v312, %v395
        %v415 = vmul.f32 %v312, %v399
        %v416 = vmul.f32 %v317, %v371
        %v417 = vmul.f32 %v317, %v375
        %v418 = vmul.f32 %v317, %v379
        %v419 = vmul.f32 %v317, %v383
        %v420 = vmul.f32 %v317, %v387
        %v421 = vmul.f32 %v317, %v391
        %v422 = vmul.f32 %v317, %v395
        %v423 = vmul.f32 %v317, %v399
        %v424 = vmul.f32 %v322, %v371
        %v425 = vmul.f32 %v322, %v375
        %v426 = vmul.f32 %v322, %v379
        %v427 = vmul.f32 %v322, %v383
        %v428 = vmul.f32 %v322, %v387
        %v429 = vmul.f32 %v322, %v391
        %v430 = vmul.f32 %v322, %v395
        %v431 = vmul.f32 %v322, %v399
        %432 = vset.pattern.permute.xlu0 1
        %433 = vperm.xlu0 %432, %v300
        %v434 = vpop.permute.xlu0 %433
        %436 = vset.pattern.permute.xlu0 1
        %437 = vperm.xlu0 %436, %v301
        %v438 = vpop.permute.xlu0 %437
        %440 = vset.pattern.permute.xlu0 1
        %441 = vperm.xlu0 %440, %v302
        %v442 = vpop.permute.xlu0 %441
        %444 = vset.pattern.permute.xlu0 1
        %445 = vperm.xlu0 %444, %v303
        %v446 = vpop.permute.xlu0 %445
        %v448 = vlaneseq
        %v449 = vshrl.u32 %v448, 7
        %v450 = vsub.s32 1, %v449
        %v451 = vrot.slane %v296, %v450
        %v452 = vlaneseq
        %v453 = vshrl.u32 %v452, 7
        %v454 = vsub.s32 5, %v453
        %v455 = vrot.slane %v296, %v454
        %v456 = vlaneseq
        %v457 = vshrl.u32 %v456, 7
        %v458 = vsub.s32 1, %v457
        %v459 = vrot.slane %v297, %v458
        %v460 = vlaneseq
        %v461 = vshrl.u32 %v460, 7
        %v462 = vsub.s32 5, %v461
        %v463 = vrot.slane %v297, %v462
        %v464 = vlaneseq
        %v465 = vshrl.u32 %v464, 7
        %v466 = vsub.s32 1, %v465
        %v467 = vrot.slane %v298, %v466
        %v468 = vlaneseq
        %v469 = vshrl.u32 %v468, 7
        %v470 = vsub.s32 5, %v469
        %v471 = vrot.slane %v298, %v470
        %v472 = vlaneseq
        %v473 = vshrl.u32 %v472, 7
        %v474 = vsub.s32 1, %v473
        %v475 = vrot.slane %v299, %v474
        %v476 = vlaneseq
        %v477 = vshrl.u32 %v476, 7
        %v478 = vsub.s32 5, %v477
        %v479 = vrot.slane %v299, %v478
        %v488 = vlaneseq
        %v489 = vshrl.u32 %v488, 7
        %v490 = vsub.s32 1, %v489
        %v491 = vrot.slane %v451, %v490
        %v492 = vlaneseq
        %v493 = vshrl.u32 %v492, 7
        %v494 = vsub.s32 1, %v493
        %v495 = vrot.slane %v455, %v494
        %v496 = vlaneseq
        %v497 = vshrl.u32 %v496, 7
        %v498 = vsub.s32 1, %v497
        %v499 = vrot.slane %v459, %v498
        %v500 = vlaneseq
        %v501 = vshrl.u32 %v500, 7
        %v502 = vsub.s32 1, %v501
        %v503 = vrot.slane %v463, %v502
        %v504 = vlaneseq
        %v505 = vshrl.u32 %v504, 7
        %v506 = vsub.s32 1, %v505
        %v507 = vrot.slane %v467, %v506
        %v508 = vlaneseq
        %v509 = vshrl.u32 %v508, 7
        %v510 = vsub.s32 1, %v509
        %v511 = vrot.slane %v471, %v510
        %v512 = vlaneseq
        %v513 = vshrl.u32 %v512, 7
        %v514 = vsub.s32 1, %v513
        %v515 = vrot.slane %v475, %v514
        %v516 = vlaneseq
        %v517 = vshrl.u32 %v516, 7
        %v518 = vsub.s32 1, %v517
        %v519 = vrot.slane %v479, %v518
        %v520 = vmul.f32 %v434, %v491
        %v521 = vmul.f32 %v434, %v495
        %v522 = vmul.f32 %v434, %v499
        %v523 = vmul.f32 %v434, %v503
        %v524 = vmul.f32 %v434, %v507
        %v525 = vmul.f32 %v434, %v511
        %v526 = vmul.f32 %v434, %v515
        %v527 = vmul.f32 %v434, %v519
        %v528 = vmul.f32 %v438, %v491
        %v529 = vmul.f32 %v438, %v495
        %v530 = vmul.f32 %v438, %v499
        %v531 = vmul.f32 %v438, %v503
        %v532 = vmul.f32 %v438, %v507
        %v533 = vmul.f32 %v438, %v511
        %v534 = vmul.f32 %v438, %v515
        %v535 = vmul.f32 %v438, %v519
        %v536 = vmul.f32 %v442, %v491
        %v537 = vmul.f32 %v442, %v495
        %v538 = vmul.f32 %v442, %v499
        %v539 = vmul.f32 %v442, %v503
        %v540 = vmul.f32 %v442, %v507
        %v541 = vmul.f32 %v442, %v511
        %v542 = vmul.f32 %v442, %v515
        %v543 = vmul.f32 %v442, %v519
        %v544 = vmul.f32 %v446, %v491
        %v545 = vmul.f32 %v446, %v495
        %v546 = vmul.f32 %v446, %v499
        %v547 = vmul.f32 %v446, %v503
        %v548 = vmul.f32 %v446, %v507
        %v549 = vmul.f32 %v446, %v511
        %v550 = vmul.f32 %v446, %v515
        %v551 = vmul.f32 %v446, %v519
        %v552 = vadd.f32 %v400, %v520
        %v553 = vadd.f32 %v401, %v521
        %v554 = vadd.f32 %v402, %v522
        %v555 = vadd.f32 %v403, %v523
        %v556 = vadd.f32 %v404, %v524
        %v557 = vadd.f32 %v405, %v525
        %v558 = vadd.f32 %v406, %v526
        %v559 = vadd.f32 %v407, %v527
        %v560 = vadd.f32 %v408, %v528
        %v561 = vadd.f32 %v409, %v529
        %v562 = vadd.f32 %v410, %v530
        %v563 = vadd.f32 %v411, %v531
        %v564 = vadd.f32 %v412, %v532
        %v565 = vadd.f32 %v413, %v533
        %v566 = vadd.f32 %v414, %v534
        %v567 = vadd.f32 %v415, %v535
        %v568 = vadd.f32 %v416, %v536
        %v569 = vadd.f32 %v417, %v537
        %v570 = vadd.f32 %v418, %v538
        %v571 = vadd.f32 %v419, %v539
        %v572 = vadd.f32 %v420, %v540
        %v573 = vadd.f32 %v421, %v541
        %v574 = vadd.f32 %v422, %v542
        %v575 = vadd.f32 %v423, %v543
        %v576 = vadd.f32 %v424, %v544
        %v577 = vadd.f32 %v425, %v545
        %v578 = vadd.f32 %v426, %v546
        %v579 = vadd.f32 %v427, %v547
        %v580 = vadd.f32 %v428, %v548
        %v581 = vadd.f32 %v429, %v549
        %v582 = vadd.f32 %v430, %v550
        %v583 = vadd.f32 %v431, %v551
        %584 = vset.pattern.permute.xlu0 2
        %585 = vperm.xlu0 %584, %v300
        %v586 = vpop.permute.xlu0 %585
        %588 = vset.pattern.permute.xlu0 2
        %589 = vperm.xlu0 %588, %v301
        %v590 = vpop.permute.xlu0 %589
        %592 = vset.pattern.permute.xlu0 2
        %593 = vperm.xlu0 %592, %v302
        %v594 = vpop.permute.xlu0 %593
        %596 = vset.pattern.permute.xlu0 2
        %597 = vperm.xlu0 %596, %v303
        %v598 = vpop.permute.xlu0 %597
        %v600 = vlaneseq
        %v601 = vshrl.u32 %v600, 7
        %v602 = vsub.s32 2, %v601
        %v603 = vrot.slane %v296, %v602
        %v604 = vlaneseq
        %v605 = vshrl.u32 %v604, 7
        %v606 = vsub.s32 6, %v605
        %v607 = vrot.slane %v296, %v606
        %v608 = vlaneseq
        %v609 = vshrl.u32 %v608, 7
        %v610 = vsub.s32 2, %v609
        %v611 = vrot.slane %v297, %v610
        %v612 = vlaneseq
        %v613 = vshrl.u32 %v612, 7
        %v614 = vsub.s32 6, %v613
        %v615 = vrot.slane %v297, %v614
        %v616 = vlaneseq
        %v617 = vshrl.u32 %v616, 7
        %v618 = vsub.s32 2, %v617
        %v619 = vrot.slane %v298, %v618
        %v620 = vlaneseq
        %v621 = vshrl.u32 %v620, 7
        %v622 = vsub.s32 6, %v621
        %v623 = vrot.slane %v298, %v622
        %v624 = vlaneseq
        %v625 = vshrl.u32 %v624, 7
        %v626 = vsub.s32 2, %v625
        %v627 = vrot.slane %v299, %v626
        %v628 = vlaneseq
        %v629 = vshrl.u32 %v628, 7
        %v630 = vsub.s32 6, %v629
        %v631 = vrot.slane %v299, %v630
        %v640 = vlaneseq
        %v641 = vshrl.u32 %v640, 7
        %v642 = vsub.s32 2, %v641
        %v643 = vrot.slane %v603, %v642
        %v644 = vlaneseq
        %v645 = vshrl.u32 %v644, 7
        %v646 = vsub.s32 2, %v645
        %v647 = vrot.slane %v607, %v646
        %v648 = vlaneseq
        %v649 = vshrl.u32 %v648, 7
        %v650 = vsub.s32 2, %v649
        %v651 = vrot.slane %v611, %v650
        %v652 = vlaneseq
        %v653 = vshrl.u32 %v652, 7
        %v654 = vsub.s32 2, %v653
        %v655 = vrot.slane %v615, %v654
        %v656 = vlaneseq
        %v657 = vshrl.u32 %v656, 7
        %v658 = vsub.s32 2, %v657
        %v659 = vrot.slane %v619, %v658
        %v660 = vlaneseq
        %v661 = vshrl.u32 %v660, 7
        %v662 = vsub.s32 2, %v661
        %v663 = vrot.slane %v623, %v662
        %v664 = vlaneseq
        %v665 = vshrl.u32 %v664, 7
        %v666 = vsub.s32 2, %v665
        %v667 = vrot.slane %v627, %v666
        %v668 = vlaneseq
        %v669 = vshrl.u32 %v668, 7
        %v670 = vsub.s32 2, %v669
        %v671 = vrot.slane %v631, %v670
        %v672 = vmul.f32 %v586, %v643
        %v673 = vmul.f32 %v586, %v647
        %v674 = vmul.f32 %v586, %v651
        %v675 = vmul.f32 %v586, %v655
        %v676 = vmul.f32 %v586, %v659
        %v677 = vmul.f32 %v586, %v663
        %v678 = vmul.f32 %v586, %v667
        %v679 = vmul.f32 %v586, %v671
        %v680 = vmul.f32 %v590, %v643
        %v681 = vmul.f32 %v590, %v647
        %v682 = vmul.f32 %v590, %v651
        %v683 = vmul.f32 %v590, %v655
        %v684 = vmul.f32 %v590, %v659
        %v685 = vmul.f32 %v590, %v663
        %v686 = vmul.f32 %v590, %v667
        %v687 = vmul.f32 %v590, %v671
        %v688 = vmul.f32 %v594, %v643
        %v689 = vmul.f32 %v594, %v647
        %v690 = vmul.f32 %v594, %v651
        %v691 = vmul.f32 %v594, %v655
        %v692 = vmul.f32 %v594, %v659
        %v693 = vmul.f32 %v594, %v663
        %v694 = vmul.f32 %v594, %v667
        %v695 = vmul.f32 %v594, %v671
        %v696 = vmul.f32 %v598, %v643
        %v697 = vmul.f32 %v598, %v647
        %v698 = vmul.f32 %v598, %v651
        %v699 = vmul.f32 %v598, %v655
        %v700 = vmul.f32 %v598, %v659
        %v701 = vmul.f32 %v598, %v663
        %v702 = vmul.f32 %v598, %v667
        %v703 = vmul.f32 %v598, %v671
        %v704 = vadd.f32 %v552, %v672
        %v705 = vadd.f32 %v553, %v673
        %v706 = vadd.f32 %v554, %v674
        %v707 = vadd.f32 %v555, %v675
        %v708 = vadd.f32 %v556, %v676
        %v709 = vadd.f32 %v557, %v677
        %v710 = vadd.f32 %v558, %v678
        %v711 = vadd.f32 %v559, %v679
        %v712 = vadd.f32 %v560, %v680
        %v713 = vadd.f32 %v561, %v681
        %v714 = vadd.f32 %v562, %v682
        %v715 = vadd.f32 %v563, %v683
        %v716 = vadd.f32 %v564, %v684
        %v717 = vadd.f32 %v565, %v685
        %v718 = vadd.f32 %v566, %v686
        %v719 = vadd.f32 %v567, %v687
        %v720 = vadd.f32 %v568, %v688
        %v721 = vadd.f32 %v569, %v689
        %v722 = vadd.f32 %v570, %v690
        %v723 = vadd.f32 %v571, %v691
        %v724 = vadd.f32 %v572, %v692
        %v725 = vadd.f32 %v573, %v693
        %v726 = vadd.f32 %v574, %v694
        %v727 = vadd.f32 %v575, %v695
        %v728 = vadd.f32 %v576, %v696
        %v729 = vadd.f32 %v577, %v697
        %v730 = vadd.f32 %v578, %v698
        %v731 = vadd.f32 %v579, %v699
        %v732 = vadd.f32 %v580, %v700
        %v733 = vadd.f32 %v581, %v701
        %v734 = vadd.f32 %v582, %v702
        %v735 = vadd.f32 %v583, %v703
        %v736 = vld [vmem:[%s2] sm:$0xff]
        %v737 = vld [vmem:[%s2 + $0x8] sm:$0xff]
        %v738 = vld [vmem:[%s2 + $0x10] sm:$0xff]
        %v739 = vld [vmem:[%s2 + $0x18] sm:$0xff]
        %741 = vset.pattern.permute.xlu0 0
        %742 = vperm.xlu0 %741, %v736
        %v743 = vpop.permute.xlu0 %742
        %746 = vset.pattern.permute.xlu0 0
        %747 = vperm.xlu0 %746, %v737
        %v748 = vpop.permute.xlu0 %747
        %751 = vset.pattern.permute.xlu0 0
        %752 = vperm.xlu0 %751, %v738
        %v753 = vpop.permute.xlu0 %752
        %756 = vset.pattern.permute.xlu0 0
        %757 = vperm.xlu0 %756, %v739
        %v758 = vpop.permute.xlu0 %757
        %v760 = vadd.f32 %v704, %v743
        %v761 = vadd.f32 %v705, %v743
        %v762 = vadd.f32 %v706, %v743
        %v763 = vadd.f32 %v707, %v743
        %v764 = vadd.f32 %v708, %v743
        %v765 = vadd.f32 %v709, %v743
        %v766 = vadd.f32 %v710, %v743
        %v767 = vadd.f32 %v711, %v743
        %v768 = vadd.f32 %v712, %v748
        %v769 = vadd.f32 %v713, %v748
        %v770 = vadd.f32 %v714, %v748
        %v771 = vadd.f32 %v715, %v748
        %v772 = vadd.f32 %v716, %v748
        %v773 = vadd.f32 %v717, %v748
        %v774 = vadd.f32 %v718, %v748
        %v775 = vadd.f32 %v719, %v748
        %v776 = vadd.f32 %v720, %v753
        %v777 = vadd.f32 %v721, %v753
        %v778 = vadd.f32 %v722, %v753
        %v779 = vadd.f32 %v723, %v753
        %v780 = vadd.f32 %v724, %v753
        %v781 = vadd.f32 %v725, %v753
        %v782 = vadd.f32 %v726, %v753
        %v783 = vadd.f32 %v727, %v753
        %v784 = vadd.f32 %v728, %v758
        %v785 = vadd.f32 %v729, %v758
        %v786 = vadd.f32 %v730, %v758
        %v787 = vadd.f32 %v731, %v758
        %v788 = vadd.f32 %v732, %v758
        %v789 = vadd.f32 %v733, %v758
        %v790 = vadd.f32 %v734, %v758
        %v791 = vadd.f32 %v735, %v758
        %v792 = vmax.f32 %v760, 0.0
        %v793 = vmax.f32 %v761, 0.0
        %v794 = vmax.f32 %v762, 0.0
        %v795 = vmax.f32 %v763, 0.0
        %v796 = vmax.f32 %v764, 0.0
        %v797 = vmax.f32 %v765, 0.0
        %v798 = vmax.f32 %v766, 0.0
        %v799 = vmax.f32 %v767, 0.0
        %v800 = vmax.f32 %v768, 0.0
        %v801 = vmax.f32 %v769, 0.0
        %v802 = vmax.f32 %v770, 0.0
        %v803 = vmax.f32 %v771, 0.0
        %v804 = vmax.f32 %v772, 0.0
        %v805 = vmax.f32 %v773, 0.0
        %v806 = vmax.f32 %v774, 0.0
        %v807 = vmax.f32 %v775, 0.0
        %v808 = vmax.f32 %v776, 0.0
        %v809 = vmax.f32 %v777, 0.0
        %v810 = vmax.f32 %v778, 0.0
        %v811 = vmax.f32 %v779, 0.0
        %v812 = vmax.f32 %v780, 0.0
        %v813 = vmax.f32 %v781, 0.0
        %v814 = vmax.f32 %v782, 0.0
        %v815 = vmax.f32 %v783, 0.0
        %v816 = vmax.f32 %v784, 0.0
        %v817 = vmax.f32 %v785, 0.0
        %v818 = vmax.f32 %v786, 0.0
        %v819 = vmax.f32 %v787, 0.0
        %v820 = vmax.f32 %v788, 0.0
        %v821 = vmax.f32 %v789, 0.0
        %v822 = vmax.f32 %v790, 0.0
        %v823 = vmax.f32 %v791, 0.0
        %824 = vst [vmem:[%s276] sm:$0xff] %v792
        %825 = vst [vmem:[%s276 + $0x8] sm:$0xff] %v793
        %826 = vst [vmem:[%s276 + $0x10] sm:$0xff] %v794
        %827 = vst [vmem:[%s276 + $0x18] sm:$0xff] %v795
        %828 = vst [vmem:[%s276 + $0x20] sm:$0xff] %v796
        %829 = vst [vmem:[%s276 + $0x28] sm:$0xff] %v797
        %830 = vst [vmem:[%s276 + $0x30] sm:$0xff] %v798
        %831 = vst [vmem:[%s276 + $0x38] sm:$0xff] %v799
        %832 = vst [vmem:[%s276 + $0x40] sm:$0xff] %v800
        %833 = vst [vmem:[%s276 + $0x48] sm:$0xff] %v801
        %834 = vst [vmem:[%s276 + $0x50] sm:$0xff] %v802
        %835 = vst [vmem:[%s276 + $0x58] sm:$0xff] %v803
        %836 = vst [vmem:[%s276 + $0x60] sm:$0xff] %v804
        %837 = vst [vmem:[%s276 + $0x68] sm:$0xff] %v805
        %838 = vst [vmem:[%s276 + $0x70] sm:$0xff] %v806
        %839 = vst [vmem:[%s276 + $0x78] sm:$0xff] %v807
        %840 = vst [vmem:[%s276 + $0x80] sm:$0xff] %v808
        %841 = vst [vmem:[%s276 + $0x88] sm:$0xff] %v809
        %842 = vst [vmem:[%s276 + $0x90] sm:$0xff] %v810
        %843 = vst [vmem:[%s276 + $0x98] sm:$0xff] %v811
        %844 = vst [vmem:[%s276 + $0xa0] sm:$0xff] %v812
        %845 = vst [vmem:[%s276 + $0xa8] sm:$0xff] %v813
        %846 = vst [vmem:[%s276 + $0xb0] sm:$0xff] %v814
        %847 = vst [vmem:[%s276 + $0xb8] sm:$0xff] %v815
        %848 = vst [vmem:[%s276 + $0xc0] sm:$0xff] %v816
        %849 = vst [vmem:[%s276 + $0xc8] sm:$0xff] %v817
        %850 = vst [vmem:[%s276 + $0xd0] sm:$0xff] %v818
        %851 = vst [vmem:[%s276 + $0xd8] sm:$0xff] %v819
        %852 = vst [vmem:[%s276 + $0xe0] sm:$0xff] %v820
        %853 = vst [vmem:[%s276 + $0xe8] sm:$0xff] %v821
        %854 = vst [vmem:[%s276 + $0xf0] sm:$0xff] %v822
        %855 = vst [vmem:[%s276 + $0xf8] sm:$0xff] %v823
        %v856 = vld [vmem:[%s3] sm:$0x1]
        %s857 = sld [smem:[#allocation2]]
        %v858 = vstv %s857
        %vm859 = vcmask 261120
        %v861 = vsel %vm859, %v856, 0
        %863 = vmatprep.subr.mxu0 0.0
        %864 = vmatpush1.msra.mxu0 0.0
        %865 = vmatprep.subr.mxu0 0.0
        %866 = vmatpush1.msra.mxu0 0.0
        %867 = vmatprep.subr.mxu0 0.0
        %868 = vmatpush1.msra.mxu0 0.0
        %869 = vmatprep.subr.mxu0 0.0
        %870 = vmatpush1.msra.mxu0 0.0
        %871 = vmatprep.subr.mxu0 0.0
        %872 = vmatpush1.msra.mxu0 0.0
        %873 = vmatprep.subr.mxu0 0.0
        %874 = vmatpush1.msra.mxu0 0.0
        %875 = vmatprep.subr.mxu0 0.0
        %876 = vmatpush1.msra.mxu0 0.0
        %877 = vmatprep.subr.mxu0 0.0
        %878 = vmatpush1.msra.mxu0 0.0
        %879 = vmatprep.subr.mxu0 0.0
        %880 = vmatpush1.msra.mxu0 0.0
        %881 = vmatprep.subr.mxu0 0.0
        %882 = vmatpush1.msra.mxu0 0.0
        %883 = vmatprep.subr.mxu0 0.0
        %884 = vmatpush1.msra.mxu0 0.0
        %885 = vmatprep.subr.mxu0 0.0
        %886 = vmatpush1.msra.mxu0 0.0
        %887 = vmatprep.subr.mxu0 %v817
        %888 = vmatpush1.msra.mxu0 %v816
        %889 = vmatprep.subr.mxu0 %v809
        %890 = vmatpush1.msra.mxu0 %v808
        %891 = vmatprep.subr.mxu0 %v801
        %892 = vmatpush1.msra.mxu0 %v800
        %893 = vmatprep.subr.mxu0 %v793
        %894 = vmatpush1.msra.mxu0 %v792
        %895 = vmatprep.subr.mxu0 0.0
        %896 = vmatpush2.msra.mxu0 0.0
        %897 = vmatprep.subr.mxu0 0.0
        %898 = vmatpush2.msra.mxu0 0.0
        %899 = vmatprep.subr.mxu0 0.0
        %900 = vmatpush2.msra.mxu0 0.0
        %901 = vmatprep.subr.mxu0 0.0
        %902 = vmatpush2.msra.mxu0 0.0
        %903 = vmatprep.subr.mxu0 0.0
        %904 = vmatpush2.msra.mxu0 0.0
        %905 = vmatprep.subr.mxu0 0.0
        %906 = vmatpush2.msra.mxu0 0.0
        %907 = vmatprep.subr.mxu0 0.0
        %908 = vmatpush2.msra.mxu0 0.0
        %909 = vmatprep.subr.mxu0 0.0
        %910 = vmatpush2.msra.mxu0 0.0
        %911 = vmatprep.subr.mxu0 0.0
        %912 = vmatpush2.msra.mxu0 0.0
        %913 = vmatprep.subr.mxu0 0.0
        %914 = vmatpush2.msra.mxu0 0.0
        %915 = vmatprep.subr.mxu0 0.0
        %916 = vmatpush2.msra.mxu0 0.0
        %917 = vmatprep.subr.mxu0 0.0
        %918 = vmatpush2.msra.mxu0 0.0
        %919 = vmatprep.subr.mxu0 0.0
        %920 = vmatpush2.msra.mxu0 0.0
        %921 = vmatprep.subr.mxu0 0.0
        %922 = vmatpush2.msra.mxu0 0.0
        %923 = vmatprep.subr.mxu0 0.0
        %924 = vmatpush2.msra.mxu0 0.0
        %925 = vmatprep.subr.mxu0 0.0
        %926 = vmatpush2.msra.mxu0 0.0
        %927 = vmatprep.mubr.f32.mxu0 0.0
        %928 = vmatmul.mubr.f32.gmra.mxu0 %v861
        %v929 = vpop.f32.mrf.mxu0
        %v930 = vadd.f32 %v858, %v929
        %v931 = vpop.f32.mrf.mxu0
        %v932 = vadd.f32 %v858, %v931
        %933 = vdwg.mxu0
        %934 = vmatprep.subr.mxu0 0.0
        %935 = vmatpush1.msra.mxu0 0.0
        %936 = vmatprep.subr.mxu0 0.0
        %937 = vmatpush1.msra.mxu0 0.0
        %938 = vmatprep.subr.mxu0 0.0
        %939 = vmatpush1.msra.mxu0 0.0
        %940 = vmatprep.subr.mxu0 0.0
        %941 = vmatpush1.msra.mxu0 0.0
        %942 = vmatprep.subr.mxu0 0.0
        %943 = vmatpush1.msra.mxu0 0.0
        %944 = vmatprep.subr.mxu0 0.0
        %945 = vmatpush1.msra.mxu0 0.0
        %946 = vmatprep.subr.mxu0 0.0
        %947 = vmatpush1.msra.mxu0 0.0
        %948 = vmatprep.subr.mxu0 0.0
        %949 = vmatpush1.msra.mxu0 0.0
        %950 = vmatprep.subr.mxu0 0.0
        %951 = vmatpush1.msra.mxu0 0.0
        %952 = vmatprep.subr.mxu0 0.0
        %953 = vmatpush1.msra.mxu0 0.0
        %954 = vmatprep.subr.mxu0 0.0
        %955 = vmatpush1.msra.mxu0 0.0
        %956 = vmatprep.subr.mxu0 0.0
        %957 = vmatpush1.msra.mxu0 0.0
        %958 = vmatprep.subr.mxu0 %v819
        %959 = vmatpush1.msra.mxu0 %v818
        %960 = vmatprep.subr.mxu0 %v811
        %961 = vmatpush1.msra.mxu0 %v810
        %962 = vmatprep.subr.mxu0 %v803
        %963 = vmatpush1.msra.mxu0 %v802
        %964 = vmatprep.subr.mxu0 %v795
        %965 = vmatpush1.msra.mxu0 %v794
        %966 = vmatprep.subr.mxu0 0.0
        %967 = vmatpush2.msra.mxu0 0.0
        %968 = vmatprep.subr.mxu0 0.0
        %969 = vmatpush2.msra.mxu0 0.0
        %970 = vmatprep.subr.mxu0 0.0
        %971 = vmatpush2.msra.mxu0 0.0
        %972 = vmatprep.subr.mxu0 0.0
        %973 = vmatpush2.msra.mxu0 0.0
        %974 = vmatprep.subr.mxu0 0.0
        %975 = vmatpush2.msra.mxu0 0.0
        %976 = vmatprep.subr.mxu0 0.0
        %977 = vmatpush2.msra.mxu0 0.0
        %978 = vmatprep.subr.mxu0 0.0
        %979 = vmatpush2.msra.mxu0 0.0
        %980 = vmatprep.subr.mxu0 0.0
        %981 = vmatpush2.msra.mxu0 0.0
        %982 = vmatprep.subr.mxu0 0.0
        %983 = vmatpush2.msra.mxu0 0.0
        %984 = vmatprep.subr.mxu0 0.0
        %985 = vmatpush2.msra.mxu0 0.0
        %986 = vmatprep.subr.mxu0 0.0
        %987 = vmatpush2.msra.mxu0 0.0
        %988 = vmatprep.subr.mxu0 0.0
        %989 = vmatpush2.msra.mxu0 0.0
        %990 = vmatprep.subr.mxu0 0.0
        %991 = vmatpush2.msra.mxu0 0.0
        %992 = vmatprep.subr.mxu0 0.0
        %993 = vmatpush2.msra.mxu0 0.0
        %994 = vmatprep.subr.mxu0 0.0
        %995 = vmatpush2.msra.mxu0 0.0
        %996 = vmatprep.subr.mxu0 0.0
        %997 = vmatpush2.msra.mxu0 0.0
        %998 = vmatprep.mubr.f32.mxu0 0.0
        %999 = vmatmul.mubr.f32.gmra.mxu0 %v861
        %v1000 = vpop.f32.mrf.mxu0
        %v1001 = vadd.f32 %v858, %v1000
        %v1002 = vpop.f32.mrf.mxu0
        %v1003 = vadd.f32 %v858, %v1002
        %1004 = vdwg.mxu0
        %1005 = vmatprep.subr.mxu0 0.0
        %1006 = vmatpush1.msra.mxu0 0.0
        %1007 = vmatprep.subr.mxu0 0.0
        %1008 = vmatpush1.msra.mxu0 0.0
        %1009 = vmatprep.subr.mxu0 0.0
        %1010 = vmatpush1.msra.mxu0 0.0
        %1011 = vmatprep.subr.mxu0 0.0
        %1012 = vmatpush1.msra.mxu0 0.0
        %1013 = vmatprep.subr.mxu0 0.0
        %1014 = vmatpush1.msra.mxu0 0.0
        %1015 = vmatprep.subr.mxu0 0.0
        %1016 = vmatpush1.msra.mxu0 0.0
        %1017 = vmatprep.subr.mxu0 0.0
        %1018 = vmatpush1.msra.mxu0 0.0
        %1019 = vmatprep.subr.mxu0 0.0
        %1020 = vmatpush1.msra.mxu0 0.0
        %1021 = vmatprep.subr.mxu0 0.0
        %1022 = vmatpush1.msra.mxu0 0.0
        %1023 = vmatprep.subr.mxu0 0.0
        %1024 = vmatpush1.msra.mxu0 0.0
        %1025 = vmatprep.subr.mxu0 0.0
        %1026 = vmatpush1.msra.mxu0 0.0
        %1027 = vmatprep.subr.mxu0 0.0
        %1028 = vmatpush1.msra.mxu0 0.0
        %1029 = vmatprep.subr.mxu0 %v821
        %1030 = vmatpush1.msra.mxu0 %v820
        %1031 = vmatprep.subr.mxu0 %v813
        %1032 = vmatpush1.msra.mxu0 %v812
        %1033 = vmatprep.subr.mxu0 %v805
        %1034 = vmatpush1.msra.mxu0 %v804
        %1035 = vmatprep.subr.mxu0 %v797
        %1036 = vmatpush1.msra.mxu0 %v796
        %1037 = vmatprep.subr.mxu0 0.0
        %1038 = vmatpush2.msra.mxu0 0.0
        %1039 = vmatprep.subr.mxu0 0.0
        %1040 = vmatpush2.msra.mxu0 0.0
        %1041 = vmatprep.subr.mxu0 0.0
        %1042 = vmatpush2.msra.mxu0 0.0
        %1043 = vmatprep.subr.mxu0 0.0
        %1044 = vmatpush2.msra.mxu0 0.0
        %1045 = vmatprep.subr.mxu0 0.0
        %1046 = vmatpush2.msra.mxu0 0.0
        %1047 = vmatprep.subr.mxu0 0.0
        %1048 = vmatpush2.msra.mxu0 0.0
        %1049 = vmatprep.subr.mxu0 0.0
        %1050 = vmatpush2.msra.mxu0 0.0
        %1051 = vmatprep.subr.mxu0 0.0
        %1052 = vmatpush2.msra.mxu0 0.0
        %1053 = vmatprep.subr.mxu0 0.0
        %1054 = vmatpush2.msra.mxu0 0.0
        %1055 = vmatprep.subr.mxu0 0.0
        %1056 = vmatpush2.msra.mxu0 0.0
        %1057 = vmatprep.subr.mxu0 0.0
        %1058 = vmatpush2.msra.mxu0 0.0
        %1059 = vmatprep.subr.mxu0 0.0
        %1060 = vmatpush2.msra.mxu0 0.0
        %1061 = vmatprep.subr.mxu0 0.0
        %1062 = vmatpush2.msra.mxu0 0.0
        %1063 = vmatprep.subr.mxu0 0.0
        %1064 = vmatpush2.msra.mxu0 0.0
        %1065 = vmatprep.subr.mxu0 0.0
        %1066 = vmatpush2.msra.mxu0 0.0
        %1067 = vmatprep.subr.mxu0 0.0
        %1068 = vmatpush2.msra.mxu0 0.0
        %1069 = vmatprep.mubr.f32.mxu0 0.0
        %1070 = vmatmul.mubr.f32.gmra.mxu0 %v861
        %v1071 = vpop.f32.mrf.mxu0
        %v1072 = vadd.f32 %v858, %v1071
        %v1073 = vpop.f32.mrf.mxu0
        %v1074 = vadd.f32 %v858, %v1073
        %1075 = vdwg.mxu0
        %1076 = vmatprep.subr.mxu0 0.0
        %1077 = vmatpush1.msra.mxu0 0.0
        %1078 = vmatprep.subr.mxu0 0.0
        %1079 = vmatpush1.msra.mxu0 0.0
        %1080 = vmatprep.subr.mxu0 0.0
        %1081 = vmatpush1.msra.mxu0 0.0
        %1082 = vmatprep.subr.mxu0 0.0
        %1083 = vmatpush1.msra.mxu0 0.0
        %1084 = vmatprep.subr.mxu0 0.0
        %1085 = vmatpush1.msra.mxu0 0.0
        %1086 = vmatprep.subr.mxu0 0.0
        %1087 = vmatpush1.msra.mxu0 0.0
        %1088 = vmatprep.subr.mxu0 0.0
        %1089 = vmatpush1.msra.mxu0 0.0
        %1090 = vmatprep.subr.mxu0 0.0
        %1091 = vmatpush1.msra.mxu0 0.0
        %1092 = vmatprep.subr.mxu0 0.0
        %1093 = vmatpush1.msra.mxu0 0.0
        %1094 = vmatprep.subr.mxu0 0.0
        %1095 = vmatpush1.msra.mxu0 0.0
        %1096 = vmatprep.subr.mxu0 0.0
        %1097 = vmatpush1.msra.mxu0 0.0
        %1098 = vmatprep.subr.mxu0 0.0
        %1099 = vmatpush1.msra.mxu0 0.0
        %1100 = vmatprep.subr.mxu0 %v823
        %1101 = vmatpush1.msra.mxu0 %v822
        %1102 = vmatprep.subr.mxu0 %v815
        %1103 = vmatpush1.msra.mxu0 %v814
        %1104 = vmatprep.subr.mxu0 %v807
        %1105 = vmatpush1.msra.mxu0 %v806
        %1106 = vmatprep.subr.mxu0 %v799
        %1107 = vmatpush1.msra.mxu0 %v798
        %1108 = vmatprep.subr.mxu0 0.0
        %1109 = vmatpush2.msra.mxu0 0.0
        %1110 = vmatprep.subr.mxu0 0.0
        %1111 = vmatpush2.msra.mxu0 0.0
        %1112 = vmatprep.subr.mxu0 0.0
        %1113 = vmatpush2.msra.mxu0 0.0
        %1114 = vmatprep.subr.mxu0 0.0
        %1115 = vmatpush2.msra.mxu0 0.0
        %1116 = vmatprep.subr.mxu0 0.0
        %1117 = vmatpush2.msra.mxu0 0.0
        %1118 = vmatprep.subr.mxu0 0.0
        %1119 = vmatpush2.msra.mxu0 0.0
        %1120 = vmatprep.subr.mxu0 0.0
        %1121 = vmatpush2.msra.mxu0 0.0
        %1122 = vmatprep.subr.mxu0 0.0
        %1123 = vmatpush2.msra.mxu0 0.0
        %1124 = vmatprep.subr.mxu0 0.0
        %1125 = vmatpush2.msra.mxu0 0.0
        %1126 = vmatprep.subr.mxu0 0.0
        %1127 = vmatpush2.msra.mxu0 0.0
        %1128 = vmatprep.subr.mxu0 0.0
        %1129 = vmatpush2.msra.mxu0 0.0
        %1130 = vmatprep.subr.mxu0 0.0
        %1131 = vmatpush2.msra.mxu0 0.0
        %1132 = vmatprep.subr.mxu0 0.0
        %1133 = vmatpush2.msra.mxu0 0.0
        %1134 = vmatprep.subr.mxu0 0.0
        %1135 = vmatpush2.msra.mxu0 0.0
        %1136 = vmatprep.subr.mxu0 0.0
        %1137 = vmatpush2.msra.mxu0 0.0
        %1138 = vmatprep.subr.mxu0 0.0
        %1139 = vmatpush2.msra.mxu0 0.0
        %1140 = vmatprep.mubr.f32.mxu0 0.0
        %1141 = vmatmul.mubr.f32.gmra.mxu0 %v861
        %v1142 = vpop.f32.mrf.mxu0
        %v1143 = vadd.f32 %v858, %v1142
        %v1144 = vpop.f32.mrf.mxu0
        %v1145 = vadd.f32 %v858, %v1144
        %1146 = vdwg.mxu0
        %v1155 = vcombine.low %v930, %v932
        %v1156 = vcombine.low %v1001, %v1003
        %v1157 = vcombine.low %v1072, %v1074
        %v1158 = vcombine.low %v1143, %v1145
        %v1160 = vunpack.c.l.s4 1966171168
        %v1161 = vunpack.c.0.s8 %v1160
        %v1162 = vlaneseq
        %v1163 = vshrl.u32 %v1162, 7
        %v1164 = vsub.s32 %v1161, %v1163
        %v1165 = vrot.slane %v1155, %v1164
        %v1167 = vunpack.c.l.s4 1966171168
        %v1168 = vunpack.c.0.s8 %v1167
        %v1169 = vlaneseq
        %v1170 = vshrl.u32 %v1169, 7
        %v1171 = vsub.s32 %v1168, %v1170
        %v1172 = vrot.slane %v1156, %v1171
        %v1174 = vunpack.c.l.s4 1966171168
        %v1175 = vunpack.c.0.s8 %v1174
        %v1176 = vlaneseq
        %v1177 = vshrl.u32 %v1176, 7
        %v1178 = vsub.s32 %v1175, %v1177
        %v1179 = vrot.slane %v1157, %v1178
        %v1181 = vunpack.c.l.s4 1966171168
        %v1182 = vunpack.c.0.s8 %v1181
        %v1183 = vlaneseq
        %v1184 = vshrl.u32 %v1183, 7
        %v1185 = vsub.s32 %v1182, %v1184
        %v1186 = vrot.slane %v1158, %v1185
        %v1187 = vcombine.low %v1165, %v1172
        %v1188 = vcombine.low %v1179, %v1186
        %v1190 = vunpack.c.l.s4 1966171168
        %v1191 = vunpack.c.0.s8 %v1190
        %v1192 = vlaneseq
        %v1193 = vshrl.u32 %v1192, 7
        %v1194 = vsub.s32 %v1191, %v1193
        %v1195 = vrot.slane %v1187, %v1194
        %v1197 = vunpack.c.l.s4 1966171168
        %v1198 = vunpack.c.0.s8 %v1197
        %v1199 = vlaneseq
        %v1200 = vshrl.u32 %v1199, 7
        %v1201 = vsub.s32 %v1198, %v1200
        %v1202 = vrot.slane %v1188, %v1201
        %v1203 = vcombine.low %v1195, %v1202
        %1205 = vst [vmem:[%s283] sm:$0xff] %v1203
        %s1206 = sand.u32 %s159, 1
        %s1207 = scalar_lea.sflag [#allocation4], %s1206
        %s1208 = sand.u32 %s159, 1
        %s1209 = smul.addr %s1208, 256
        %s1210 = scalar_lea.vmem [#allocation3], %s1209
        %s1211 = sand.u32 %s187, 1
        %s1212 = scalar_lea.sflag [#allocation6], %s1211
        %s1213 = sand.u32 %s187, 1
        %s1214 = smul.addr %s1213, 8
        %s1215 = scalar_lea.vmem [#allocation5], %s1214
        // Predicated region
        $region41: #{tpu_custom_call.1} parent=39 // pred_check
          %p1216 = pneg %p169
        $region42: #{tpu_custom_call.1} parent=39 // pred_check_branch
          %1218 = sbr.rel (%p1216) target = $region44
        $region43: #{tpu_custom_call.1} parent=39 // pred_region
          %s1219 = smul.u32 8, %s30
          %s1221 = ssub.s32 4096, 4096
          %1222 = vsyncadd %s1207, %s1221
          %s1223 = smul.addr %s29, 32
          %s1224 = sadd.s32 %s1219, %s1223
          %s1225 = smul.addr %s1224, 128
          %s1226 = scalar_lea.hbm %s5, %s1225
          %s1227 = sshll.u32 %s1210, 4
          %s1228 = int_to_ptr.vmem [resolvable:$true] %s1227
          %1233 = dma.vmem_to_hbm [thread:$0]  %s1228, 4096, %s1226, %s1207, 1024, 1024, 64
        $region44: #{tpu_custom_call.1} parent=39 // pred_fallthru
          _
        // Predicated region
        $region45: #{tpu_custom_call.1} parent=39 // pred_check
          %p1234 = pneg %p197
        $region46: #{tpu_custom_call.1} parent=39 // pred_check_branch
          %1236 = sbr.rel (%p1234) target = $region48
        $region47: #{tpu_custom_call.1} parent=39 // pred_region
          %s1237 = smul.u32 8, %s30
          %s1239 = ssub.s32 128, 128
          %1240 = vsyncadd %s1212, %s1239
          %s1241 = smul.addr %s29, 8
          %s1242 = sadd.s32 %s1237, %s1241
          %s1243 = smul.addr %s1242, 16
          %s1244 = scalar_lea.hbm %s6, %s1243
          %s1246 = sshll.u32 %s1215, 4
          %s1247 = int_to_ptr.vmem [resolvable:$true] %s1246
          %1249 = dma.vmem_to_hbm [thread:$0]  %s1247, 128, %s1244, %s1212
        $region48: #{tpu_custom_call.1} parent=39 // pred_fallthru
          _
      $region40: #{tpu_custom_call.1} parent=5 // pred_fallthru
        _
      %p1250 = scmp.le.s32.totalorder 2, %s20
      // Predicated region
      $region49: #{tpu_custom_call.1} parent=5 // pred_check
        %p1251 = pneg %p1250
      $region50: #{tpu_custom_call.1} parent=5 // pred_check_branch
        %1253 = sbr.rel (%p1251) target = $region52
      $region51: #{tpu_custom_call.1} parent=5 // pred_region
        %s1254 = ssub.s32 %s20, 2
        // Predicated region
        $region53: #{tpu_custom_call.1} parent=51 // pred_check
          %p1255 = pneg %p175
        $region54: #{tpu_custom_call.1} parent=51 // pred_check_branch
          %1257 = sbr.rel (%p1255) target = $region56
        $region55: #{tpu_custom_call.1} parent=51 // pred_region
          %s1258 = sand.u32 %s160, 1
          %s1259 = scalar_lea.sflag [#allocation4], %s1258
          %s1260 = sand.u32 %s160, 1
          %s1261 = smul.addr %s1260, 256
          %s1262 = scalar_lea.vmem [#allocation3], %s1261
          %1263 = dma.done %s1259, 4096
        $region56: #{tpu_custom_call.1} parent=51 // pred_fallthru
          _
        // Predicated region
        $region57: #{tpu_custom_call.1} parent=51 // pred_check
          %p1264 = pneg %p203
        $region58: #{tpu_custom_call.1} parent=51 // pred_check_branch
          %1266 = sbr.rel (%p1264) target = $region60
        $region59: #{tpu_custom_call.1} parent=51 // pred_region
          %s1267 = sand.u32 %s188, 1
          %s1268 = scalar_lea.sflag [#allocation6], %s1267
          %s1269 = sand.u32 %s188, 1
          %s1270 = smul.addr %s1269, 8
          %s1271 = scalar_lea.vmem [#allocation5], %s1270
          %1272 = dma.done %s1268, 128
        $region60: #{tpu_custom_call.1} parent=51 // pred_fallthru
          _
      $region52: #{tpu_custom_call.1} parent=5 // pred_fallthru
        _
    $region6: #{tpu_custom_call.1} parent=1 // loop_footer
      %s24 = sadd.s32 1, %s20
    $region7: #{tpu_custom_call.1} parent=1 // loop_footer_branch
      %19 = sbr.rel target = $region3
    $region8: #{tpu_custom_call.1} parent=1 // loop_exit
      _
    %1273 = vsyncpa [#allocation4], 1
    %s1274 = scalar_lea.sflag [#allocation4], 1
    %1275 = vsyncpa %s1274, 1
    %1276 = vsyncpa [#allocation6], 1
    %s1277 = scalar_lea.sflag [#allocation6], 1
    %1278 = vsyncpa %s1277, 1

</llo_original>
